<compile_context>
chip_gen: v7x
topology: tpu7x:2x2x1
jax: 0.10.0
libtpu: 0.0.40
codegen_flags: <defaults>
</compile_context>

<pallas_src>
import functools
import math

import jax
import jax.numpy as jnp
import numpy as np
from jax.experimental import pallas as pl
from jax.experimental.pallas import tpu as pltpu


# -----------------------------------------------------------------------------
# Small helpers shared by kernels and reference
# -----------------------------------------------------------------------------
_LN_EPS = 1e-5
_GELU_C = math.sqrt(2.0 / math.pi)
_NEG_BIG = -1e30   # finite "minus infinity" for masking (avoids inf-inf NaNs)


def _layernorm(x, gamma, beta):
    mu = jnp.mean(x, axis=-1, keepdims=True)
    var = jnp.mean((x - mu) ** 2, axis=-1, keepdims=True)
    return (x - mu) * jax.lax.rsqrt(var + _LN_EPS) * gamma + beta


def _new_gelu(x):
    return 0.5 * x * (1.0 + jnp.tanh(_GELU_C * (x + 0.044715 * x * x * x)))


def _pick_tile(n, preferred):
    """Largest candidate tile (<= preferred) that evenly divides n, else n."""
    for c in (preferred, 512, 256, 128, 64, 32, 16, 8):
        if c <= n and n % c == 0:
            return c
    return n


# -----------------------------------------------------------------------------
# Pallas kernels
# -----------------------------------------------------------------------------
def _ln_qkv_kernel(x_ref, g_ref, b_ref, w_ref, bias_ref, o_ref):
    """LayerNorm (ln_1) + fused QKV projection for a tile of rows."""
    x = x_ref[...]                                         # (tm, C) f32
    xn = _layernorm(x, g_ref[...], b_ref[...])             # f32
    qkv = jnp.dot(xn.astype(jnp.bfloat16), w_ref[...],     # bf16 x bf16 -> f32 acc
                  preferred_element_type=jnp.float32)
    qkv = qkv + bias_ref[...]
    o_ref[...] = qkv.astype(o_ref.dtype)                   # emit bf16


def _flash_attn_kernel(q_ref, k_ref, v_ref, o_ref, m_sc, l_sc, acc_sc, *, scale):
    """Causal flash attention for one (batch*head, q-tile) across kv tiles."""
    tq = q_ref.shape[1]
    tk = k_ref.shape[1]
    qi = pl.program_id(1)
    ki = pl.program_id(2)

    @pl.when(ki == 0)
    def _init():
        m_sc[...] = jnp.full_like(m_sc, _NEG_BIG)
        l_sc[...] = jnp.zeros_like(l_sc)
        acc_sc[...] = jnp.zeros_like(acc_sc)

    # Skip kv tiles that lie entirely above the causal diagonal.
    @pl.when(ki * tk <= qi * tq + (tq - 1))
    def _compute():
        q = q_ref[0] * scale                               # (tq, hd) bf16, 1/hd folded in
        k = k_ref[0]                                       # (tk, hd) bf16
        v = v_ref[0]                                       # (tk, hd) bf16
        # q @ k^T without an explicit transpose (contract the hd dims).
        s = jax.lax.dot_general(q, k, (((1,), (1,)), ((), ())),
                                preferred_element_type=jnp.float32)   # (tq, tk)
        row = qi * tq + jax.lax.broadcasted_iota(jnp.int32, (tq, tk), 0)
        col = ki * tk + jax.lax.broadcasted_iota(jnp.int32, (tq, tk), 1)
        s = s + jnp.where(col > row, _NEG_BIG, 0.0)        # additive finite mask

        m_prev = m_sc[...]
        m_new = jnp.maximum(m_prev, jnp.max(s, axis=-1, keepdims=True))
        alpha = jnp.exp(m_prev - m_new)
        p = jnp.exp(s - m_new)                             # f32
        l_sc[...] = alpha * l_sc[...] + jnp.sum(p, axis=-1, keepdims=True)
        acc_sc[...] = alpha * acc_sc[...] + jnp.dot(
            p.astype(v.dtype), v, preferred_element_type=jnp.float32)
        m_sc[...] = m_new

    @pl.when(ki == pl.num_programs(2) - 1)
    def _finalize():
        inv_l = pl.reciprocal(l_sc[...], approx=True)      # EUP, off the VALU path
        o_ref[0] = (acc_sc[...] * inv_l).astype(o_ref.dtype)


def _proj_mlp_kernel(x_ref, y_ref, wp_ref, bp_ref, g2_ref, b2_ref,
                     wfc_ref, bfc_ref, wmp_ref, bmp_ref, o_ref):
    """attn c_proj + residual, then ln_2 + MLP (c_fc, NewGELU, c_proj) + residual."""
    x = x_ref[...]                                         # (tm, C) f32
    y = y_ref[...]                                         # (tm, C) bf16 (attn output)

    attn = jnp.dot(y, wp_ref[...], preferred_element_type=jnp.float32)
    x = x + attn + bp_ref[...]

    xn2 = _layernorm(x, g2_ref[...], b2_ref[...])
    h1 = jnp.dot(xn2.astype(jnp.bfloat16), wfc_ref[...],
                 preferred_element_type=jnp.float32) + bfc_ref[...]
    h1 = _new_gelu(h1)                                     # f32 elementwise
    h2 = jnp.dot(h1.astype(jnp.bfloat16), wmp_ref[...],
                 preferred_element_type=jnp.float32) + bmp_ref[...]
    o_ref[...] = x + h2


def _head_kernel(x_ref, g_ref, b_ref, w_ref, o_ref, *, output_mult):
    """Final LayerNorm + MuReadout for a (row-tile, vocab-tile) block."""
    xn = _layernorm(x_ref[...], g_ref[...], b_ref[...])
    logits = jnp.dot(xn.astype(jnp.bfloat16), w_ref[...],
                     preferred_element_type=jnp.float32)
    o_ref[...] = logits * output_mult


# -----------------------------------------------------------------------------
# Pallas wrappers
# -----------------------------------------------------------------------------
def ln_qkv_forward(x2, g, b, w, bias):
    N, C = x2.shape
    O = w.shape[1]
    tm = _pick_tile(N, 256)
    return pl.pallas_call(
        _ln_qkv_kernel,
        out_shape=jax.ShapeDtypeStruct((N, O), jnp.bfloat16),
        grid=(N // tm,),
        in_specs=[pl.BlockSpec((tm, C), lambda i: (i, 0)),
                  pl.BlockSpec(g.shape, lambda i: (0, 0)),
                  pl.BlockSpec(b.shape, lambda i: (0, 0)),
                  pl.BlockSpec(w.shape, lambda i: (0, 0)),
                  pl.BlockSpec(bias.shape, lambda i: (0, 0))],
        out_specs=pl.BlockSpec((tm, O), lambda i: (i, 0)),
        compiler_params=pltpu.CompilerParams(
            dimension_semantics=("parallel",)),
    )(x2, g, b, w, bias)


def attention_forward(q, k, v, *, scale):
    """q,k,v: (B*H, T, hd) bf16 -> (B*H, T, hd) bf16 causal attention."""
    BH, T, hd = q.shape
    tq = _pick_tile(T, 128)
    tk = _pick_tile(T, 128)
    kern = functools.partial(_flash_attn_kernel, scale=scale)
    return pl.pallas_call(
        kern,
        out_shape=jax.ShapeDtypeStruct((BH, T, hd), jnp.bfloat16),
        grid=(BH, T // tq, T // tk),
        in_specs=[pl.BlockSpec((1, tq, hd), lambda b, qi, ki: (b, qi, 0)),
                  pl.BlockSpec((1, tk, hd), lambda b, qi, ki: (b, ki, 0)),
                  pl.BlockSpec((1, tk, hd), lambda b, qi, ki: (b, ki, 0))],
        out_specs=pl.BlockSpec((1, tq, hd), lambda b, qi, ki: (b, qi, 0)),
        scratch_shapes=[pltpu.VMEM((tq, 1), jnp.float32),    # running max m
                        pltpu.VMEM((tq, 1), jnp.float32),    # running sum l
                        pltpu.VMEM((tq, hd), jnp.float32)],  # output accumulator
        compiler_params=pltpu.CompilerParams(
            dimension_semantics=("parallel", "parallel", "arbitrary")),
    )(q, k, v)


def proj_mlp_forward(x2, y2, bp):
    N, C = x2.shape
    tm = _pick_tile(N, 256)
    args = (x2, y2, bp["w_attn_proj"], bp["b_attn_proj"], bp["ln2_g"], bp["ln2_b"],
            bp["w_fc"], bp["b_fc"], bp["w_mlp_proj"], bp["b_mlp_proj"])
    in_specs = [pl.BlockSpec((tm, C), lambda i: (i, 0)),
                pl.BlockSpec((tm, C), lambda i: (i, 0))]
    in_specs += [pl.BlockSpec(a.shape, lambda i: (0, 0)) for a in args[2:]]
    return pl.pallas_call(
        _proj_mlp_kernel,
        out_shape=jax.ShapeDtypeStruct((N, C), jnp.float32),
        grid=(N // tm,),
        in_specs=in_specs,
        out_specs=pl.BlockSpec((tm, C), lambda i: (i, 0)),
        compiler_params=pltpu.CompilerParams(
            dimension_semantics=("parallel",)),
    )(*args)


def head_forward(x2, lnf_g, lnf_b, w_lm, output_mult):
    """x2: (B*T, C) f32 -> logits (B*T, V) f32, vocab-tiled lm_head."""
    N, C = x2.shape
    V = w_lm.shape[1]
    tm = _pick_tile(N, 256)
    tv = _pick_tile(V, 512)
    kern = functools.partial(_head_kernel, output_mult=output_mult)
    return pl.pallas_call(
        kern,
        out_shape=jax.ShapeDtypeStruct((N, V), jnp.float32),
        grid=(N // tm, V // tv),
        in_specs=[pl.BlockSpec((tm, C), lambda i, j: (i, 0)),
                  pl.BlockSpec(lnf_g.shape, lambda i, j: (0, 0)),
                  pl.BlockSpec(lnf_b.shape, lambda i, j: (0, 0)),
                  pl.BlockSpec((C, tv), lambda i, j: (0, j))],
        out_specs=pl.BlockSpec((tm, tv), lambda i, j: (i, j)),
        compiler_params=pltpu.CompilerParams(
            dimension_semantics=("parallel", "parallel")),
    )(x2, lnf_g, lnf_b, w_lm)


def block_forward(x, bp, n_head):
    """One transformer block: (B, T, C) f32 -> (B, T, C) f32."""
    B, T, C = x.shape
    H = n_head
    hd = C // H
    x2 = x.reshape(B * T, C)

    qkv = ln_qkv_forward(x2, bp["ln1_g"], bp["ln1_b"],
                         bp["w_qkv"], bp["b_qkv"])                 # (B*T, 3C) bf16
    # Head split in plain JAX glue (layout matches the fused c_attn column order).
    qkv = qkv.reshape(B, T, 3, H, hd)
    q = qkv[:, :, 0].transpose(0, 2, 1, 3).reshape(B * H, T, hd)
    k = qkv[:, :, 1].transpose(0, 2, 1, 3).reshape(B * H, T, hd)
    v = qkv[:, :, 2].transpose(0, 2, 1, 3).reshape(B * H, T, hd)

    y = attention_forward(q, k, v, scale=1.0 / hd)                 # (B*H, T, hd) bf16
    # Re-merge heads; resulting column order (h*hd + d) matches w_attn_proj rows.
    y2 = y.reshape(B, H, T, hd).transpose(0, 2, 1, 3).reshape(B * T, C)

    out = proj_mlp_forward(x2, y2, bp)                             # (B*T, C) f32
    return out.reshape(B, T, C)


# -----------------------------------------------------------------------------
# Model: parameter construction (mulo_init=True, attn_type='fused') + forward
# -----------------------------------------------------------------------------
def init_mugpt_params(key, *, vocab_size, block_size, n_layer, n_head, n_embd,
                      encoder_var=1.0):
    C = n_embd
    sigma = (encoder_var / C) ** 0.5
    cproj_std = 0.02 / math.sqrt(2 * n_layer)
    keys = iter(jax.random.split(key, 2 + 8 * n_layer))
    bf16 = jnp.bfloat16

    params = {
        "wte": (sigma * jax.random.normal(next(keys), (vocab_size, C))).astype(jnp.float32),
        "wpe": (sigma * jax.random.normal(next(keys), (block_size, C))).astype(jnp.float32),
        "lnf_g": jnp.ones((1, C), jnp.float32),
        "lnf_b": jnp.zeros((1, C), jnp.float32),
        # lm_head (MuReadout) weight is zero-initialized per _reset_parameters_mulo;
        # stored pre-transposed (in, out), bf16.
        "w_lm": jnp.zeros((C, vocab_size), bf16),
        "blocks": [],
    }
    for _ in range(n_layer):
        bp = {
            "ln1_g": jnp.ones((1, C), jnp.float32),
            "ln1_b": jnp.zeros((1, C), jnp.float32),
            "ln2_g": jnp.ones((1, C), jnp.float32),
            "ln2_b": jnp.zeros((1, C), jnp.float32),
            # c_attn: weight ~ N(0, sigma), bias ~ N(0, 1)   (stored (in, out), bf16)
            "w_qkv": (sigma * jax.random.normal(next(keys), (C, 3 * C))).astype(bf16),
            "b_qkv": jax.random.normal(next(keys), (1, 3 * C)).astype(jnp.float32),
            # attn c_proj: weight ~ N(0, 0.02/sqrt(2L)), bias ~ N(0, 1)
            "w_attn_proj": (cproj_std * jax.random.normal(next(keys), (C, C))).astype(bf16),
            "b_attn_proj": jax.random.normal(next(keys), (1, C)).astype(jnp.float32),
            # mlp c_fc: weight ~ N(0, sigma), bias ~ N(0, 1)
            "w_fc": (sigma * jax.random.normal(next(keys), (C, 4 * C))).astype(bf16),
            "b_fc": jax.random.normal(next(keys), (1, 4 * C)).astype(jnp.float32),
            # mlp c_proj: weight ~ N(0, 0.02/sqrt(2L)), bias ~ N(0, 1)
            "w_mlp_proj": (cproj_std * jax.random.normal(next(keys), (4 * C, C))).astype(bf16),
            "b_mlp_proj": jax.random.normal(next(keys), (1, C)).astype(jnp.float32),
        }
        params["blocks"].append(bp)
    return params


def mugpt_forward(params, idx, *, n_head, output_mult=1.0, return_hidden=False):
    """idx: (B, T) int32  ->  logits: (B*T, vocab) float32."""
    B, T = idx.shape
    tok_emb = jnp.take(params["wte"], idx, axis=0)          # (B, T, C)
    pos_emb = params["wpe"][:T][None, :, :]                 # (1, T, C)
    x = tok_emb + pos_emb                                   # drop = identity (eval)

    for bp in params["blocks"]:
        x = block_forward(x, bp, n_head)

    C = x.shape[-1]
    logits = head_forward(x.reshape(B * T, C), params["lnf_g"], params["lnf_b"],
                          params["w_lm"], output_mult)
    if return_hidden:
        return logits, x
    return logits


# -----------------------------------------------------------------------------
# Pure-JAX references (mirroring the mixed-precision scheme of the kernels)
# -----------------------------------------------------------------------------
def _reference_hidden(params, idx, n_head):
    bf16 = jnp.bfloat16
    B, T = idx.shape
    x = jnp.take(params["wte"], idx, axis=0) + params["wpe"][:T][None]
    row = jnp.arange(T)[:, None]
    col = jnp.arange(T)[None, :]
    addmask = jnp.where(col > row, _NEG_BIG, 0.0).astype(jnp.float32)
    for bp in params["blocks"]:
        C = x.shape[-1]
        hd = C // n_head
        xn = _layernorm(x, bp["ln1_g"], bp["ln1_b"])
        qkv = jnp.einsum("btc,cf->btf", xn.astype(bf16), bp["w_qkv"],
                         preferred_element_type=jnp.float32) + bp["b_qkv"]
        qkv = qkv.astype(bf16).reshape(B, T, 3, n_head, hd)
        q, k, v = qkv[:, :, 0], qkv[:, :, 1], qkv[:, :, 2]
        att = jnp.einsum("bthd,bshd->bhts", q * (1.0 / hd), k,
                         preferred_element_type=jnp.float32)
        att = att + addmask[None, None]
        p = jax.nn.softmax(att, axis=-1)
        y = jnp.einsum("bhts,bshd->bthd", p.astype(bf16), v,
                       preferred_element_type=jnp.float32)
        y = y.reshape(B, T, C).astype(bf16)
        x = x + (jnp.einsum("btc,cd->btd", y, bp["w_attn_proj"],
                            preferred_element_type=jnp.float32) + bp["b_attn_proj"])
        xn2 = _layernorm(x, bp["ln2_g"], bp["ln2_b"])
        h1 = jnp.einsum("btc,cf->btf", xn2.astype(bf16), bp["w_fc"],
                        preferred_element_type=jnp.float32) + bp["b_fc"]
        h1 = _new_gelu(h1)
        h2 = jnp.einsum("btf,fc->btc", h1.astype(bf16), bp["w_mlp_proj"],
                        preferred_element_type=jnp.float32) + bp["b_mlp_proj"]
        x = x + h2
    return x


def _reference_logits(hidden, lnf_g, lnf_b, w_lm, output_mult):
    B, T, C = hidden.shape
    xn = _layernorm(hidden.reshape(B * T, C), lnf_g, lnf_b)
    return output_mult * jnp.dot(xn.astype(jnp.bfloat16), w_lm,
                                 preferred_element_type=jnp.float32)


# -----------------------------------------------------------------------------
if __name__ == "__main__":
    # Small "gpt-nano"-ish config
    VOCAB, BLOCK, N_LAYER, N_HEAD, N_EMBD = 64, 16, 2, 4, 32
    B, T = 2, 8
    OUTPUT_MULT = 1.0

    key = jax.random.PRNGKey(0)
    pkey, ikey, hkey = jax.random.split(key, 3)
    params = init_mugpt_params(pkey, vocab_size=VOCAB, block_size=BLOCK,
                               n_layer=N_LAYER, n_head=N_HEAD, n_embd=N_EMBD)
    idx = jax.random.randint(ikey, (B, T), 0, VOCAB, dtype=jnp.int32)

    logits, hidden = mugpt_forward(params, idx, n_head=N_HEAD,
                                   output_mult=OUTPUT_MULT, return_hidden=True)
    logits = jax.block_until_ready(logits)
    hidden = jax.block_until_ready(hidden)
    assert logits.shape == (B * T, VOCAB)

    # 1) Sanity check of the transformer-block Pallas path against pure JAX.
    ref_hidden = jax.block_until_ready(_reference_hidden(params, idx, N_HEAD))
    np.testing.assert_allclose(np.asarray(hidden), np.asarray(ref_hidden),
                               rtol=2e-2, atol=2e-2)

    # 2) Module semantics: zero-initialized MuReadout -> logits are exactly zero.
    np.testing.assert_array_equal(np.asarray(logits), 0.0)

    # 3) Numerical check of the (vocab-tiled) head kernel with a non-zero
    #    test-only weight, so the check is not trivially zero.
    w_test = (0.02 * jax.random.normal(hkey, (N_EMBD, VOCAB))).astype(jnp.bfloat16)
    logits_t = jax.block_until_ready(
        head_forward(hidden.reshape(B * T, N_EMBD), params["lnf_g"],
                     params["lnf_b"], w_test, OUTPUT_MULT))
    ref_logits = jax.block_until_ready(
        _reference_logits(hidden, params["lnf_g"], params["lnf_b"],
                          w_test, OUTPUT_MULT))
    np.testing.assert_allclose(np.asarray(logits_t), np.asarray(ref_logits),
                               rtol=2e-2, atol=2e-2)

    print("KERNEL_OK")
</pallas_src>

<mosaic_0001>
module attributes {stable_mosaic.version = 11 : i64} {
  func.func @_ln_qkv_kernel(%arg0: i32, %arg1: memref<16x32xf32, #tpu.memory_space<vmem>>, %arg2: memref<1x32xf32, #tpu.memory_space<vmem>>, %arg3: memref<1x32xf32, #tpu.memory_space<vmem>>, %arg4: memref<32x96xbf16, #tpu.memory_space<vmem>>, %arg5: memref<1x96xf32, #tpu.memory_space<vmem>>, %arg6: memref<16x96xbf16, #tpu.memory_space<vmem>>) attributes {dimension_semantics = [#tpu.dimension_semantics<parallel>], iteration_bounds = array<i64: 1>, scalar_prefetch = 0 : i64, scratch_operands = 0 : i64, tpu.core_type = #tpu.core_type<tc>, window_params = [{transform_indices = @transform_0, window_bounds = array<i64: 16, 32>}, {pipeline_mode = #tpu.pipeline_mode<synchronous>, transform_indices = @transform_1, window_bounds = array<i64: 1, 32>}, {pipeline_mode = #tpu.pipeline_mode<synchronous>, transform_indices = @transform_2, window_bounds = array<i64: 1, 32>}, {pipeline_mode = #tpu.pipeline_mode<synchronous>, transform_indices = @transform_3, window_bounds = array<i64: 32, 96>}, {pipeline_mode = #tpu.pipeline_mode<synchronous>, transform_indices = @transform_4, window_bounds = array<i64: 1, 96>}, {transform_indices = @transform_5, window_bounds = array<i64: 16, 96>}]} {
    %c0 = arith.constant 0 : index
    %c0_0 = arith.constant 0 : index
    %0 = vector.load %arg1[%c0, %c0_0] : memref<16x32xf32, #tpu.memory_space<vmem>>, vector<16x32xf32>
    %c0_1 = arith.constant 0 : index
    %c0_2 = arith.constant 0 : index
    %1 = vector.load %arg2[%c0_1, %c0_2] : memref<1x32xf32, #tpu.memory_space<vmem>>, vector<1x32xf32>
    %c0_3 = arith.constant 0 : index
    %c0_4 = arith.constant 0 : index
    %2 = vector.load %arg3[%c0_3, %c0_4] : memref<1x32xf32, #tpu.memory_space<vmem>>, vector<1x32xf32>
    %cst = arith.constant dense<0.000000e+00> : vector<16xf32>
    %3 = vector.multi_reduction <add>, %0, %cst [1] : vector<16x32xf32> to vector<16xf32>
    %4 = vector.shape_cast %3 : vector<16xf32> to vector<16x1xf32>
    %cst_5 = arith.constant 3.200000e+01 : f32
    %5 = vector.broadcast %cst_5 : f32 to vector<16x1xf32>
    %6 = arith.divf %4, %5 : vector<16x1xf32>
    %7 = vector.broadcast %6 : vector<16x1xf32> to vector<16x32xf32>
    %8 = arith.subf %0, %7 : vector<16x32xf32>
    %9 = arith.mulf %8, %8 : vector<16x32xf32>
    %cst_6 = arith.constant dense<0.000000e+00> : vector<16xf32>
    %10 = vector.multi_reduction <add>, %9, %cst_6 [1] : vector<16x32xf32> to vector<16xf32>
    %11 = vector.shape_cast %10 : vector<16xf32> to vector<16x1xf32>
    %cst_7 = arith.constant 3.200000e+01 : f32
    %12 = vector.broadcast %cst_7 : f32 to vector<16x1xf32>
    %13 = arith.divf %11, %12 : vector<16x1xf32>
    %14 = vector.broadcast %6 : vector<16x1xf32> to vector<16x32xf32>
    %15 = arith.subf %0, %14 : vector<16x32xf32>
    %cst_8 = arith.constant 9.99999974E-6 : f32
    %16 = vector.broadcast %cst_8 : f32 to vector<16x1xf32>
    %17 = arith.addf %13, %16 : vector<16x1xf32>
    %18 = math.rsqrt %17 : vector<16x1xf32>
    %19 = vector.broadcast %18 : vector<16x1xf32> to vector<16x32xf32>
    %20 = arith.mulf %15, %19 : vector<16x32xf32>
    %21 = vector.broadcast %1 : vector<1x32xf32> to vector<16x32xf32>
    %22 = arith.mulf %20, %21 : vector<16x32xf32>
    %23 = vector.broadcast %2 : vector<1x32xf32> to vector<16x32xf32>
    %24 = arith.addf %22, %23 : vector<16x32xf32>
    %25 = arith.truncf %24 : vector<16x32xf32> to vector<16x32xbf16>
    %c0_9 = arith.constant 0 : index
    %c0_10 = arith.constant 0 : index
    %26 = vector.load %arg4[%c0_9, %c0_10] : memref<32x96xbf16, #tpu.memory_space<vmem>>, vector<32x96xbf16>
    %cst_11 = arith.constant dense<0.000000e+00> : vector<16x96xf32>
    %27 = tpu.matmul %25, %26, %cst_11 {dimension_numbers = #tpu.dot_dimension_numbers<[1], [0], [0], [1], [0, 0, 1, 1], [], []>} : vector<16x32xbf16>, vector<32x96xbf16>, vector<16x96xf32> -> vector<16x96xf32>
    %c0_12 = arith.constant 0 : index
    %c0_13 = arith.constant 0 : index
    %28 = vector.load %arg5[%c0_12, %c0_13] : memref<1x96xf32, #tpu.memory_space<vmem>>, vector<1x96xf32>
    %29 = vector.broadcast %28 : vector<1x96xf32> to vector<16x96xf32>
    %30 = arith.addf %27, %29 : vector<16x96xf32>
    %31 = arith.truncf %30 : vector<16x96xf32> to vector<16x96xbf16>
    %c0_14 = arith.constant 0 : index
    %c0_15 = arith.constant 0 : index
    %32 = vector.load %arg6[%c0_14, %c0_15] : memref<16x96xbf16, #tpu.memory_space<vmem>>, vector<16x96xbf16>
    tpu.vector_store %arg6[%c0_14, %c0_15], %31 {strides = array<i32>} : memref<16x96xbf16, #tpu.memory_space<vmem>>, vector<16x96xbf16>,
    return
  }
  func.func @transform_0(%arg0: i32) -> (i32, i32) {
    %c0_i32 = arith.constant 0 : i32
    %c0_i32_0 = arith.constant 0 : i32
    return %arg0, %c0_i32 : i32, i32
  }
  func.func @transform_1(%arg0: i32) -> (i32, i32) {
    %c0_i32 = arith.constant 0 : i32
    %c0_i32_0 = arith.constant 0 : i32
    %c0_i32_1 = arith.constant 0 : i32
    return %c0_i32, %c0_i32_0 : i32, i32
  }
  func.func @transform_2(%arg0: i32) -> (i32, i32) {
    %c0_i32 = arith.constant 0 : i32
    %c0_i32_0 = arith.constant 0 : i32
    %c0_i32_1 = arith.constant 0 : i32
    return %c0_i32, %c0_i32_0 : i32, i32
  }
  func.func @transform_3(%arg0: i32) -> (i32, i32) {
    %c0_i32 = arith.constant 0 : i32
    %c0_i32_0 = arith.constant 0 : i32
    %c0_i32_1 = arith.constant 0 : i32
    return %c0_i32, %c0_i32_0 : i32, i32
  }
  func.func @transform_4(%arg0: i32) -> (i32, i32) {
    %c0_i32 = arith.constant 0 : i32
    %c0_i32_0 = arith.constant 0 : i32
    %c0_i32_1 = arith.constant 0 : i32
    return %c0_i32, %c0_i32_0 : i32, i32
  }
  func.func @transform_5(%arg0: i32) -> (i32, i32) {
    %c0_i32 = arith.constant 0 : i32
    %c0_i32_0 = arith.constant 0 : i32
    return %arg0, %c0_i32 : i32, i32
  }
}

</mosaic_0001>

<llo_original>
// kernel: tpu_custom_call.1
$region0: #{tpu_custom_call.1}
  #allocation0 [shape = 'u32[]', space=smem, size = 0x4, offset = 0x4, fixed_abs, tag = 'smem constant byte address 0x4 - core index']
  #allocation1 [shape = 'u32[144,128]{1,0:T(1,128)}', space=vmem, size = 0x12000, scoped, tag = 'internal scratch']
  %s0 = inlined_call_operand.hbm [shape: f32[16,32], index: 0, kind: input, shape index: {}]
  %s1 = inlined_call_operand.vmem [shape: f32[1,32], index: 1, kind: input, shape index: {}]
  %s2 = inlined_call_operand.vmem [shape: f32[1,32], index: 2, kind: input, shape index: {}]
  %s3 = inlined_call_operand.hbm [shape: bf16[32,96], index: 3, kind: input, shape index: {}]
  %s4 = inlined_call_operand.vmem [shape: f32[1,96], index: 4, kind: input, shape index: {}]
  %s5 = inlined_call_operand.hbm [shape: bf16[16,96], index: 5, kind: output, shape index: {}]
  %s6 = sld [smem:[#allocation0]]
  $region38: #{tpu_custom_call.1} parent=0
    _
  %s8 = ssub.s32 1, %s6
  %s9 = scalar_select 0, %s8, %s6
  $region1: #{tpu_custom_call.1} parent=0
    #allocation2 [shape = 'u8[8192]{0}', space=vmem, size = 0x2000, scoped, tag = 'input window, operand 0, single buffered']
    #allocation3 [shape = 's32[1]{0}', space=sflag, size = 0x4, scoped, tag = 'scoped memory for tpu_custom_call.1']
    #allocation4 [shape = 's32[1]{0}', space=sflag, size = 0x4, scoped, tag = 'scoped memory for tpu_custom_call.1']
    #allocation5 [shape = 'u8[8192]{0}', space=vmem, size = 0x2000, scoped, tag = 'input window, operand 3, single buffered']
    #allocation6 [shape = 's32[1]{0}', space=sflag, size = 0x4, scoped, tag = 'scoped memory for tpu_custom_call.1']
    #allocation7 [shape = 'u8[4096]{0}', space=vmem, size = 0x1000, scoped, tag = 'output window, operand 0, single buffered']
    %10 = vsyncpa [#allocation3], 0
    %11 = vsyncpa [#allocation6], 0
    %12 = vsyncpa [#allocation4], 0
    // Predicated region
    $region2: #{tpu_custom_call.1} parent=1 // pred_check
      _
    $region3: #{tpu_custom_call.1} parent=1 // pred_check_branch
      %14 = sbr.rel (0) target = $region5
    $region4: #{tpu_custom_call.1} parent=1 // pred_region
      %s16 = ssub.s32 256, 256
      %17 = vsyncadd [#allocation3], %s16
      %s18 = sshll.u32 [#allocation2], 4
      %s19 = int_to_ptr.vmem [resolvable:$true] %s18
      %24 = dma.hbm_to_vmem [thread:$0]  %s0, 256, %s19, [#allocation3], 128, 128, 8
    $region5: #{tpu_custom_call.1} parent=1 // pred_fallthru
      _
    // Predicated region
    $region6: #{tpu_custom_call.1} parent=1 // pred_check
      _
    $region7: #{tpu_custom_call.1} parent=1 // pred_check_branch
      %26 = sbr.rel (0) target = $region9
    $region8: #{tpu_custom_call.1} parent=1 // pred_region
      _
    $region9: #{tpu_custom_call.1} parent=1 // pred_fallthru
      _
    // Predicated region
    $region10: #{tpu_custom_call.1} parent=1 // pred_check
      _
    $region11: #{tpu_custom_call.1} parent=1 // pred_check_branch
      %28 = sbr.rel (0) target = $region13
    $region12: #{tpu_custom_call.1} parent=1 // pred_region
      _
    $region13: #{tpu_custom_call.1} parent=1 // pred_fallthru
      _
    // Predicated region
    $region14: #{tpu_custom_call.1} parent=1 // pred_check
      _
    $region15: #{tpu_custom_call.1} parent=1 // pred_check_branch
      %30 = sbr.rel (0) target = $region17
    $region16: #{tpu_custom_call.1} parent=1 // pred_region
      %s32 = ssub.s32 256, 256
      %33 = vsyncadd [#allocation6], %s32
      %s34 = sshll.u32 [#allocation5], 4
      %s35 = int_to_ptr.vmem [resolvable:$true] %s34
      %40 = dma.hbm_to_vmem [thread:$0]  %s3, 256, %s35, [#allocation6], 64, 64, 4
    $region17: #{tpu_custom_call.1} parent=1 // pred_fallthru
      _
    // Predicated region
    $region18: #{tpu_custom_call.1} parent=1 // pred_check
      _
    $region19: #{tpu_custom_call.1} parent=1 // pred_check_branch
      %42 = sbr.rel (0) target = $region21
    $region20: #{tpu_custom_call.1} parent=1 // pred_region
      _
    $region21: #{tpu_custom_call.1} parent=1 // pred_fallthru
      _
    // Predicated region
    $region22: #{tpu_custom_call.1} parent=1 // pred_check
      _
    $region23: #{tpu_custom_call.1} parent=1 // pred_check_branch
      %44 = sbr.rel (0) target = $region25
    $region24: #{tpu_custom_call.1} parent=1 // pred_region
      %45 = dma.done [#allocation3], 256
    $region25: #{tpu_custom_call.1} parent=1 // pred_fallthru
      _
    // Predicated region
    $region26: #{tpu_custom_call.1} parent=1 // pred_check
      _
    $region27: #{tpu_custom_call.1} parent=1 // pred_check_branch
      %47 = sbr.rel (0) target = $region29
    $region28: #{tpu_custom_call.1} parent=1 // pred_region
      %48 = dma.done [#allocation6], 256
    $region29: #{tpu_custom_call.1} parent=1 // pred_fallthru
      _
    %v50 = vld [vmem:[#allocation2] sm:$0xff]
    %v51 = vld [vmem:[#allocation2 + $0x8] sm:$0xff]
    %v52 = vld [vmem:[%s1] sm:$0x1]
    %v53 = vld [vmem:[%s2] sm:$0x1]
    %vm54 = vcmask 261120
    %v55 = vsel %vm54, %v50, 0.0
    %56 = vadd.xlane.f32.xlu0 %v55
    %v57 = vpop.xlane.xlu0 %56
    %v58 = vsel %vm54, %v51, 0.0
    %59 = vadd.xlane.f32.xlu0 %v58
    %v60 = vpop.xlane.xlu0 %59
    %v61 = vrcp.pop 32.0
    %v62 = vmul.f32 %v57, %v61
    %v63 = vmul.f32 %v60, %v61
    %v64 = vsub.f32 %v50, %v62
    %v65 = vsub.f32 %v51, %v63
    %v66 = vmul.f32 %v64, %v64
    %v67 = vmul.f32 %v65, %v65
    %v68 = vsel %vm54, %v66, 0.0
    %69 = vadd.xlane.f32.xlu0 %v68
    %v70 = vpop.xlane.xlu0 %69
    %v71 = vsel %vm54, %v67, 0.0
    %72 = vadd.xlane.f32.xlu0 %v71
    %v73 = vpop.xlane.xlu0 %72
    %v74 = vmul.f32 %v70, %v61
    %v75 = vmul.f32 %v73, %v61
    %v76 = vadd.f32 %v74, 1e-05
    %v77 = vadd.f32 %v75, 1e-05
    %v78 = vrsqrt.pop %v76
    %v79 = vrsqrt.pop %v77
    %v80 = vmul.f32 %v64, %v78
    %v81 = vmul.f32 %v65, %v79
    %v83 = vlaneseq
    %v84 = vshrl.u32 %v83, 7
    %v85 = vsub.s32 0, %v84
    %v86 = vrot.slane %v52, %v85
    %v88 = vmul.f32 %v80, %v86
    %v89 = vmul.f32 %v81, %v86
    %v91 = vlaneseq
    %v92 = vshrl.u32 %v91, 7
    %v93 = vsub.s32 0, %v92
    %v94 = vrot.slane %v53, %v93
    %v96 = vadd.f32 %v88, %v94
    %v97 = vadd.f32 %v89, %v94
    %v98 = vpack.c.bf16 %v97, %v96
    %v99 = vld [vmem:[#allocation5] sm:$0xf]
    %v100 = vld [vmem:[#allocation5 + $0x4] sm:$0xf]
    %v101 = vld [vmem:[#allocation5 + $0x8] sm:$0xf]
    %v102 = vld [vmem:[#allocation5 + $0xc] sm:$0xf]
    %v103 = vld [vmem:[%s4] sm:$0x1]
    %v105 = vlaneseq
    %v106 = vshrl.u32 %v105, 7
    %v107 = vsub.s32 0, %v106
    %v108 = vrot.slane %v103, %v107
    %v114 = vunpack.c.l.b16 %v99
    %v115 = vunpack.c.l.b16 %v100
    %v116 = vunpack.c.l.b16 %v101
    %v117 = vunpack.c.l.b16 %v102
    %v118 = vpack.c.b16 %v115, %v114
    %v119 = vpack.c.b16 %v117, %v116
    %v123 = vsel %vm54, %v98, 0
    %125 = vmatprep.subr.bf16.mxu0 0
    %126 = vmatpush1.bf16.msra.mxu0 %v118
    %127 = vmatprep.subr.bf16.mxu0 0
    %128 = vmatpush1.bf16.msra.mxu0 %v119
    %129 = vmatprep.subr.bf16.mxu0 0
    %130 = vmatpush1.bf16.msra.mxu0 0
    %131 = vmatprep.subr.bf16.mxu0 0
    %132 = vmatpush1.bf16.msra.mxu0 0
    %133 = vmatprep.subr.bf16.mxu0 0
    %134 = vmatpush1.bf16.msra.mxu0 0
    %135 = vmatprep.subr.bf16.mxu0 0
    %136 = vmatpush1.bf16.msra.mxu0 0
    %137 = vmatprep.subr.bf16.mxu0 0
    %138 = vmatpush1.bf16.msra.mxu0 0
    %139 = vmatprep.subr.bf16.mxu0 0
    %140 = vmatpush1.bf16.msra.mxu0 0
    %141 = vmatprep.subr.bf16.mxu0 0
    %142 = vmatpush1.bf16.msra.mxu0 0
    %143 = vmatprep.subr.bf16.mxu0 0
    %144 = vmatpush1.bf16.msra.mxu0 0
    %145 = vmatprep.subr.bf16.mxu0 0
    %146 = vmatpush1.bf16.msra.mxu0 0
    %147 = vmatprep.subr.bf16.mxu0 0
    %148 = vmatpush1.bf16.msra.mxu0 0
    %149 = vmatprep.subr.bf16.mxu0 0
    %150 = vmatpush1.bf16.msra.mxu0 0
    %151 = vmatprep.subr.bf16.mxu0 0
    %152 = vmatpush1.bf16.msra.mxu0 0
    %153 = vmatprep.subr.bf16.mxu0 0
    %154 = vmatpush1.bf16.msra.mxu0 0
    %155 = vmatprep.subr.bf16.mxu0 0
    %156 = vmatpush1.bf16.msra.mxu0 0
    %157 = vmatprep.mubr.bf16.mxu0 0
    %158 = vmatmul.mubr.bf16.gmra.mrb[0].mxu0 %v123
    %v159 = vpop.f32.mrb[0].mxu0
    %v160 = vadd.f32 %v108, %v159
    %v161 = vpop.f32.mrb[0].mxu0
    %v162 = vpop.f32.mrb[0].mxu0
    %v163 = vadd.f32 %v108, %v162
    %v164 = vpop.f32.mrb[0].mxu0
    %165 = vdwg.mxu0
    %v166 = vpack.c.bf16 %v163, %v160
    %v168 = vunpack.c.l.b16 %v166
    %v169 = vunpack.c.h.b16 %v166
    %v170 = vpack.c.b16 %v168, %v168
    %v171 = vpack.c.b16 %v169, %v169
    %vm174 = vcmask 781312
    %175 = vst.msk [vmem:[#allocation7] sm:$0xf] %vm174, %v170
    %176 = vst.msk [vmem:[#allocation7 + $0x4] sm:$0xf] %vm174, %v171
    // Predicated region
    $region30: #{tpu_custom_call.1} parent=1 // pred_check
      _
    $region31: #{tpu_custom_call.1} parent=1 // pred_check_branch
      %178 = sbr.rel (0) target = $region33
    $region32: #{tpu_custom_call.1} parent=1 // pred_region
      %s180 = ssub.s32 128, 128
      %181 = vsyncadd [#allocation4], %s180
      %s182 = sshll.u32 [#allocation7], 4
      %s183 = int_to_ptr.vmem [resolvable:$true] %s182
      %188 = dma.vmem_to_hbm [thread:$0]  %s183, 128, %s5, [#allocation4], 64, 64, 4
    $region33: #{tpu_custom_call.1} parent=1 // pred_fallthru
      _
    // Predicated region
    $region34: #{tpu_custom_call.1} parent=1 // pred_check
      _
    $region35: #{tpu_custom_call.1} parent=1 // pred_check_branch
      %190 = sbr.rel (0) target = $region37
    $region36: #{tpu_custom_call.1} parent=1 // pred_region
      %191 = dma.done [#allocation4], 128
    $region37: #{tpu_custom_call.1} parent=1 // pred_fallthru
      _
    %192 = vsyncpa [#allocation3], 1
    %193 = vsyncpa [#allocation6], 1
    %194 = vsyncpa [#allocation4], 1

</llo_original>
